<compile_context>
chip_gen: v6e
topology: v6e:2x2x1
jax: 0.10.0
libtpu: 0.0.40
codegen_flags: <defaults>
</compile_context>

<pallas_src>
import functools

import jax
import jax.numpy as jnp
from jax.experimental import pallas as pl
from jax.experimental.pallas import tpu as pltpu


def _round_up(x: int, m: int) -> int:
    return (x + m - 1) // m * m


def _interaction_kernel(dense_ref, sparse_ref, out_ref):
    """One batch tile.

    dense_ref : (bt, D)                 float32
    sparse_ref: (bt, F, D)              float32
    out_ref   : (bt, D + F*(F+1)//2)    float32
    """
    dense = dense_ref[...]                       # (bt, D)    f32
    sparse = sparse_ref[...]                     # (bt, F, D) f32
    F = sparse.shape[1]

    # Single bf16 MXU operand holding all F+1 feature rows.  Dense is appended
    # as the LAST row so the F sparse rows keep their sublane positions (no
    # sublane shift of the whole sparse tile); the bf16 cast happens here,
    # under the tile DMA, instead of as a separate XLA pass in the wrapper.
    combined = jnp.concatenate(
        [sparse.astype(jnp.bfloat16),
         dense[:, None, :].astype(jnp.bfloat16)],
        axis=1)                                  # (bt, F+1, D) bf16

    # One batched MXU matmul (bf16 inputs, f32 accumulation) for ALL pairwise
    # interactions, dense row included.  This is the same 'bqd,bkd->bqk'
    # contraction form the flash-attention kernels use, so no per-batch RHS
    # transpose is inserted.
    inter = jnp.einsum("bnd,bmd->bnm", combined, combined,
                       preferred_element_type=jnp.float32)   # (bt, F+1, F+1)

    # Strict upper triangle of the torch-ordered [dense, s_0..s_{F-1}] matrix
    # in row-major order (== torch.triu_indices(F+1, F+1, offset=1)).  With
    # dense stored as our row F:
    #   torch row 0   (dense . s_j)            -> inter[:, F, 0:F]
    #   torch row n>0 (s_{n-1} . s_j, j >= n)  -> inter[:, n-1, n:F]
    # Kept as static slices + a single lane concat (see header comment for why
    # the selection-matmul variant was not used).
    pieces = [dense, inter[:, F, 0:F]]
    for i in range(F - 1):
        pieces.append(inter[:, i, i + 1:F])      # (bt, F-1-i)

    out_ref[...] = jnp.concatenate(pieces, axis=-1).astype(out_ref.dtype)


@functools.partial(jax.jit, static_argnames=("num_sparse_features", "block_b"))
def interaction_arch(dense_features, sparse_features, *, num_sparse_features,
                     block_b=512):
    """Pallas implementation of InteractionArch.forward."""
    F = int(num_sparse_features)
    dense_f32 = dense_features.astype(jnp.float32)
    if F <= 0:
        return dense_f32

    # Keep sparse in float32 in HBM (no extra wrapper astype pass over the
    # dominant input when it is already float); the bf16 cast for the MXU is
    # done in-kernel where it hides under the DMA.
    sparse_f32 = sparse_features.astype(jnp.float32)

    B, D = dense_f32.shape
    P = F * (F + 1) // 2
    W = D + P

    # ---- batch-tile selection with padded-layout-aware VMEM accounting ----
    def tile_bytes(bt):
        d_in = bt * _round_up(D, 128) * 4
        s_in = bt * _round_up(F, 8) * _round_up(D, 128) * 4
        o_out = bt * _round_up(W, 128) * 4
        comb = bt * _round_up(F + 1, 8) * _round_up(D, 128) * 2
        inter = bt * _round_up(F + 1, 8) * _round_up(F + 1, 128) * 4
        pack = 2 * bt * _round_up(W, 128) * 4
        # double-buffered IO tiles + single-buffered in-kernel intermediates
        return 2 * (d_in + s_in + o_out) + comb + inter + pack

    try:
        vmem_cap = int(pltpu.get_tpu_info().vmem_capacity_bytes)
    except Exception:
        vmem_cap = 64 << 20                  # conservative (v7x-sized) default
    budget = max(vmem_cap // 3, 12 << 20)

    bt = _round_up(min(int(block_b), _round_up(B, 8)), 8)
    if B >= 16:                              # >=2 grid steps: megacore + pipelining
        bt = min(bt, _round_up((B + 1) // 2, 8))
    while tile_bytes(bt) > budget and bt > 8:
        bt = max(8, (bt // 2) // 8 * 8)

    grid = (pl.cdiv(B, bt),)                 # ragged last tile handled by Pallas masking
    vmem_limit = int(min(max(2 * tile_bytes(bt), 16 << 20), (3 * vmem_cap) // 4))

    cost = pl.CostEstimate(
        flops=2 * B * (F + 1) * (F + 1) * D,
        transcendentals=0,
        bytes_accessed=B * D * 4 + B * F * D * 4 + B * W * 4,
    )

    return pl.pallas_call(
        _interaction_kernel,
        out_shape=jax.ShapeDtypeStruct((B, W), jnp.float32),
        grid_spec=pltpu.PrefetchScalarGridSpec(
            num_scalar_prefetch=0,
            grid=grid,
            in_specs=[
                pl.BlockSpec((bt, D), lambda i: (i, 0)),
                pl.BlockSpec((bt, F, D), lambda i: (i, 0, 0)),
            ],
            out_specs=pl.BlockSpec((bt, W), lambda i: (i, 0)),
        ),
        compiler_params=pltpu.CompilerParams(
            dimension_semantics=("parallel",),
            vmem_limit_bytes=vmem_limit,
        ),
        cost_estimate=cost,
    )(dense_f32, sparse_f32)


def _reference(dense, sparse, *, matmul_dtype=jnp.float32):
    """Pure-JAX reference mirroring the PyTorch forward.

    `matmul_dtype` rounds the interaction-matmul operands (use bfloat16 to
    mirror the kernel's bf16-input / f32-accumulation MXU path)."""
    d = dense.astype(matmul_dtype).astype(jnp.float32)
    s = sparse.astype(matmul_dtype).astype(jnp.float32)
    combined = jnp.concatenate([d[:, None, :], s], axis=1)
    inter = jnp.einsum("bnd,bmd->bnm", combined, combined,
                       precision=jax.lax.Precision.HIGHEST)
    T = sparse.shape[1] + 1
    r, c = jnp.triu_indices(T, k=1)
    flat = inter[:, r, c]
    return jnp.concatenate([dense.astype(jnp.float32), flat], axis=1)


if __name__ == "__main__":
    B, D, F = 8, 32, 7  # batch, embedding dim, num sparse features

    key = jax.random.PRNGKey(0)
    k_dense, k_sparse = jax.random.split(key)
    dense = jax.random.normal(k_dense, (B, D), dtype=jnp.float32)
    # sparse_features are (pooled) embedding vectors in DLRM -> float values.
    sparse = jax.random.normal(k_sparse, (B, F, D), dtype=jnp.float32)

    out = interaction_arch(dense, sparse, num_sparse_features=F)
    out = jax.block_until_ready(out)

    assert out.shape == (B, D + F * (F + 1) // 2), out.shape

    # Validate against a reference that mirrors the kernel's bf16-operand /
    # f32-accumulation matmul numerics (dense passthrough stays exact f32).
    ref = _reference(dense, sparse, matmul_dtype=jnp.bfloat16)
    assert jnp.allclose(out, ref, atol=2e-3, rtol=2e-3), "mismatch vs reference"
    assert jnp.allclose(out[:, :D], dense), "dense passthrough not exact"

    print("KERNEL_OK")
</pallas_src>

<mosaic_0001>
module attributes {stable_mosaic.version = 11 : i64} {
  func.func @_interaction_kernel(%arg0: i32, %arg1: memref<8x32xf32, #tpu.memory_space<vmem>>, %arg2: memref<8x7x32xf32, #tpu.memory_space<vmem>>, %arg3: memref<8x60xf32, #tpu.memory_space<vmem>>) attributes {dimension_semantics = [#tpu.dimension_semantics<parallel>], iteration_bounds = array<i64: 1>, scalar_prefetch = 0 : i64, scratch_operands = 0 : i64, tpu.core_type = #tpu.core_type<tc>, window_params = [{transform_indices = @transform_0, window_bounds = array<i64: 8, 32>}, {transform_indices = @transform_1, window_bounds = array<i64: 8, 7, 32>}, {transform_indices = @transform_2, window_bounds = array<i64: 8, 60>}]} {
    %c0 = arith.constant 0 : index
    %c0_0 = arith.constant 0 : index
    %0 = vector.load %arg1[%c0, %c0_0] : memref<8x32xf32, #tpu.memory_space<vmem>>, vector<8x32xf32>
    %c0_1 = arith.constant 0 : index
    %c0_2 = arith.constant 0 : index
    %c0_3 = arith.constant 0 : index
    %1 = vector.load %arg2[%c0_1, %c0_2, %c0_3] : memref<8x7x32xf32, #tpu.memory_space<vmem>>, vector<8x7x32xf32>
    %2 = arith.truncf %1 : vector<8x7x32xf32> to vector<8x7x32xbf16>
    %3 = vector.shape_cast %0 : vector<8x32xf32> to vector<8x1x32xf32>
    %4 = arith.truncf %3 : vector<8x1x32xf32> to vector<8x1x32xbf16>
    %5 = tpu.concatenate %2, %4 in 1 : vector<8x7x32xbf16>, vector<8x1x32xbf16> -> vector<8x8x32xbf16>
    "tpu.trace_start"() <{level = 10 : i32, message = "bnd,bmd->bnm"}> : () -> ()
    %cst = arith.constant dense<0.000000e+00> : vector<8x8x8xf32>
    %6 = tpu.matmul %5, %5, %cst {dimension_numbers = #tpu.dot_dimension_numbers<[2], [2], [1], [1], [0, 0, 0, 1, 1, 1], [0], [0]>} : vector<8x8x32xbf16>, vector<8x8x32xbf16>, vector<8x8x8xf32> -> vector<8x8x8xf32>
    "tpu.trace_stop"() : () -> ()
    %7 = vector.extract_strided_slice %6 {offsets = [0, 7, 0], sizes = [8, 1, 7], strides = [1, 1, 1]} : vector<8x8x8xf32> to vector<8x1x7xf32>
    %8 = vector.shape_cast %7 : vector<8x1x7xf32> to vector<8x7xf32>
    %9 = vector.extract_strided_slice %6 {offsets = [0, 0, 1], sizes = [8, 1, 6], strides = [1, 1, 1]} : vector<8x8x8xf32> to vector<8x1x6xf32>
    %10 = vector.shape_cast %9 : vector<8x1x6xf32> to vector<8x6xf32>
    %11 = vector.extract_strided_slice %6 {offsets = [0, 1, 2], sizes = [8, 1, 5], strides = [1, 1, 1]} : vector<8x8x8xf32> to vector<8x1x5xf32>
    %12 = vector.shape_cast %11 : vector<8x1x5xf32> to vector<8x5xf32>
    %13 = vector.extract_strided_slice %6 {offsets = [0, 2, 3], sizes = [8, 1, 4], strides = [1, 1, 1]} : vector<8x8x8xf32> to vector<8x1x4xf32>
    %14 = vector.shape_cast %13 : vector<8x1x4xf32> to vector<8x4xf32>
    %15 = vector.extract_strided_slice %6 {offsets = [0, 3, 4], sizes = [8, 1, 3], strides = [1, 1, 1]} : vector<8x8x8xf32> to vector<8x1x3xf32>
    %16 = vector.shape_cast %15 : vector<8x1x3xf32> to vector<8x3xf32>
    %17 = vector.extract_strided_slice %6 {offsets = [0, 4, 5], sizes = [8, 1, 2], strides = [1, 1, 1]} : vector<8x8x8xf32> to vector<8x1x2xf32>
    %18 = vector.shape_cast %17 : vector<8x1x2xf32> to vector<8x2xf32>
    %19 = vector.extract_strided_slice %6 {offsets = [0, 5, 6], sizes = [8, 1, 1], strides = [1, 1, 1]} : vector<8x8x8xf32> to vector<8x1x1xf32>
    %20 = vector.shape_cast %19 : vector<8x1x1xf32> to vector<8x1xf32>
    %21 = tpu.concatenate %0, %8, %10, %12, %14, %16, %18, %20 in 1 : vector<8x32xf32>, vector<8x7xf32>, vector<8x6xf32>, vector<8x5xf32>, vector<8x4xf32>, vector<8x3xf32>, vector<8x2xf32>, vector<8x1xf32> -> vector<8x60xf32>
    %c0_4 = arith.constant 0 : index
    %c0_5 = arith.constant 0 : index
    %22 = vector.load %arg3[%c0_4, %c0_5] : memref<8x60xf32, #tpu.memory_space<vmem>>, vector<8x60xf32>
    tpu.vector_store %arg3[%c0_4, %c0_5], %21 {strides = array<i32>} : memref<8x60xf32, #tpu.memory_space<vmem>>, vector<8x60xf32>,
    return
  }
  func.func @transform_0(%arg0: i32) -> (i32, i32) {
    %c0_i32 = arith.constant 0 : i32
    %c0_i32_0 = arith.constant 0 : i32
    return %arg0, %c0_i32 : i32, i32
  }
  func.func @transform_1(%arg0: i32) -> (i32, i32, i32) {
    %c0_i32 = arith.constant 0 : i32
    %c0_i32_0 = arith.constant 0 : i32
    %c0_i32_1 = arith.constant 0 : i32
    return %arg0, %c0_i32, %c0_i32_0 : i32, i32, i32
  }
  func.func @transform_2(%arg0: i32) -> (i32, i32) {
    %c0_i32 = arith.constant 0 : i32
    %c0_i32_0 = arith.constant 0 : i32
    return %arg0, %c0_i32 : i32, i32
  }
}

</mosaic_0001>

<llo_original>
// kernel: interaction_arch.1
$region0: #{interaction_arch.1}
  #allocation0 [shape = 'u32[]', space=smem, size = 0x4, offset = 0x4, fixed_abs, tag = 'smem constant byte address 0x4 - core index']
  #allocation1 [shape = 'u32[144,128]{1,0:T(1,128)}', space=vmem, size = 0x12000, scoped, tag = 'internal scratch']
  %s0 = inlined_call_operand.vmem [shape: f32[8,32], index: 0, kind: input, shape index: {}]
  %s1 = inlined_call_operand.vmem [shape: f32[8,7,32], index: 1, kind: input, shape index: {}]
  %s2 = inlined_call_operand.hbm [shape: f32[8,60], index: 2, kind: output, shape index: {}]
  %s3 = sld [smem:[#allocation0]]
  $region18: #{interaction_arch.1} parent=0
    _
  %s5 = ssub.s32 1, %s3
  %s6 = scalar_select 0, %s5, %s3
  $region1: #{interaction_arch.1} parent=0
    #allocation2 [shape = 'u8[4096]{0}', space=vmem, size = 0x1000, scoped, tag = 'output window, operand 0, single buffered']
    #allocation3 [shape = 's32[1]{0}', space=sflag, size = 0x4, scoped, tag = 'scoped memory for interaction_arch.1']
    %7 = vsyncpa [#allocation3], 0
    // Predicated region
    $region2: #{interaction_arch.1} parent=1 // pred_check
      _
    $region3: #{interaction_arch.1} parent=1 // pred_check_branch
      %9 = sbr.rel (0) target = $region5
    $region4: #{interaction_arch.1} parent=1 // pred_region
      _
    $region5: #{interaction_arch.1} parent=1 // pred_fallthru
      _
    // Predicated region
    $region6: #{interaction_arch.1} parent=1 // pred_check
      _
    $region7: #{interaction_arch.1} parent=1 // pred_check_branch
      %11 = sbr.rel (0) target = $region9
    $region8: #{interaction_arch.1} parent=1 // pred_region
      _
    $region9: #{interaction_arch.1} parent=1 // pred_fallthru
      _
    %v13 = vld [vmem:[%s0] sm:$0xff]
    %v14 = vld [vmem:[%s1] sm:$0x7f]
    %v15 = vld [vmem:[%s1 + $0x8] sm:$0x7f]
    %v16 = vld [vmem:[%s1 + $0x10] sm:$0x7f]
    %v17 = vld [vmem:[%s1 + $0x18] sm:$0x7f]
    %v18 = vld [vmem:[%s1 + $0x20] sm:$0x7f]
    %v19 = vld [vmem:[%s1 + $0x28] sm:$0x7f]
    %v20 = vld [vmem:[%s1 + $0x30] sm:$0x7f]
    %v21 = vld [vmem:[%s1 + $0x38] sm:$0x7f]
    %v22 = vpack.c.bf16 %v14, %v14
    %v23 = vpack.c.bf16 %v15, %v15
    %v24 = vpack.c.bf16 %v16, %v16
    %v25 = vpack.c.bf16 %v17, %v17
    %v26 = vpack.c.bf16 %v18, %v18
    %v27 = vpack.c.bf16 %v19, %v19
    %v28 = vpack.c.bf16 %v20, %v20
    %v29 = vpack.c.bf16 %v21, %v21
    %v31 = vcombine.high %v13, %v13
    %v33 = vunpack.c.l.s4 1966171168
    %v34 = vunpack.c.0.s8 %v33
    %v35 = vlaneseq
    %v36 = vshrl.u32 %v35, 7
    %v37 = vsub.s32 %v34, %v36
    %v38 = vrot.slane %v13, %v37
    %v40 = vunpack.c.l.s4 1966171168
    %v41 = vunpack.c.0.s8 %v40
    %v42 = vlaneseq
    %v43 = vshrl.u32 %v42, 7
    %v44 = vsub.s32 %v41, %v43
    %v45 = vrot.slane %v31, %v44
    %v46 = vcombine.high %v38, %v38
    %v47 = vcombine.high %v45, %v45
    %v49 = vunpack.c.l.s4 1966171168
    %v50 = vunpack.c.0.s8 %v49
    %v51 = vlaneseq
    %v52 = vshrl.u32 %v51, 7
    %v53 = vsub.s32 %v50, %v52
    %v54 = vrot.slane %v38, %v53
    %v56 = vunpack.c.l.s4 1966171168
    %v57 = vunpack.c.0.s8 %v56
    %v58 = vlaneseq
    %v59 = vshrl.u32 %v58, 7
    %v60 = vsub.s32 %v57, %v59
    %v61 = vrot.slane %v45, %v60
    %v63 = vunpack.c.l.s4 1966171168
    %v64 = vunpack.c.0.s8 %v63
    %v65 = vlaneseq
    %v66 = vshrl.u32 %v65, 7
    %v67 = vsub.s32 %v64, %v66
    %v68 = vrot.slane %v46, %v67
    %v70 = vunpack.c.l.s4 1966171168
    %v71 = vunpack.c.0.s8 %v70
    %v72 = vlaneseq
    %v73 = vshrl.u32 %v72, 7
    %v74 = vsub.s32 %v71, %v73
    %v75 = vrot.slane %v47, %v74
    %v76 = vcombine.high %v54, %v54
    %v77 = vcombine.high %v61, %v61
    %v78 = vcombine.high %v68, %v68
    %v79 = vcombine.high %v75, %v75
    %v88 = vpack.c.bf16 %v54, %v54
    %v89 = vpack.c.bf16 %v68, %v68
    %v90 = vpack.c.bf16 %v76, %v76
    %v91 = vpack.c.bf16 %v78, %v78
    %v92 = vpack.c.bf16 %v61, %v61
    %v93 = vpack.c.bf16 %v75, %v75
    %v94 = vpack.c.bf16 %v77, %v77
    %v95 = vpack.c.bf16 %v79, %v79
    %v97 = vshll.u32 %v88, 16
    %v99 = vrot.slane %v97, 5
    %v101 = vshll.u32 %v89, 16
    %v103 = vrot.slane %v101, 5
    %v105 = vshll.u32 %v90, 16
    %v107 = vrot.slane %v105, 5
    %v109 = vshll.u32 %v91, 16
    %v111 = vrot.slane %v109, 5
    %v113 = vshll.u32 %v92, 16
    %v115 = vrot.slane %v113, 5
    %v117 = vshll.u32 %v93, 16
    %v119 = vrot.slane %v117, 5
    %v121 = vshll.u32 %v94, 16
    %v123 = vrot.slane %v121, 5
    %v125 = vshll.u32 %v95, 16
    %v127 = vrot.slane %v125, 5
    %vm136 = vcmask 1043456
    %vm137 = vsmask.f32 3328
    %vm138 = vmand %vm136, %vm137
    %v139 = vsel %vm138, %v22, %v99
    %v140 = vsel %vm138, %v23, %v103
    %v141 = vsel %vm138, %v24, %v107
    %v142 = vsel %vm138, %v25, %v111
    %v143 = vsel %vm138, %v26, %v115
    %v144 = vsel %vm138, %v27, %v119
    %v145 = vsel %vm138, %v28, %v123
    %v146 = vsel %vm138, %v29, %v127
    %vm147 = vcmask 261120
    %v149 = vsel %vm147, %v139, 0
    %151 = vmatprep.subr.bf16.mxu0 0
    %152 = vmatpush1.bf16.xpose.msra.mxu0 0
    %153 = vmatprep.subr.bf16.mxu0 0
    %154 = vmatpush1.bf16.xpose.msra.mxu0 0
    %155 = vmatprep.subr.bf16.mxu0 0
    %156 = vmatpush1.bf16.xpose.msra.mxu0 0
    %157 = vmatprep.subr.bf16.mxu0 0
    %158 = vmatpush1.bf16.xpose.msra.mxu0 0
    %159 = vmatprep.subr.bf16.mxu0 0
    %160 = vmatpush1.bf16.xpose.msra.mxu0 0
    %161 = vmatprep.subr.bf16.mxu0 0
    %162 = vmatpush1.bf16.xpose.msra.mxu0 0
    %163 = vmatprep.subr.bf16.mxu0 0
    %164 = vmatpush1.bf16.xpose.msra.mxu0 0
    %165 = vmatprep.subr.bf16.mxu0 0
    %166 = vmatpush1.bf16.xpose.msra.mxu0 %v149
    %167 = vmatprep.subr.bf16.mxu0 0
    %168 = vmatpush2.bf16.xpose.msra.mxu0 0
    %169 = vmatprep.subr.bf16.mxu0 0
    %170 = vmatpush2.bf16.xpose.msra.mxu0 0
    %171 = vmatprep.subr.bf16.mxu0 0
    %172 = vmatpush2.bf16.xpose.msra.mxu0 0
    %173 = vmatprep.subr.bf16.mxu0 0
    %174 = vmatpush2.bf16.xpose.msra.mxu0 0
    %175 = vmatprep.subr.bf16.mxu0 0
    %176 = vmatpush2.bf16.xpose.msra.mxu0 0
    %177 = vmatprep.subr.bf16.mxu0 0
    %178 = vmatpush2.bf16.xpose.msra.mxu0 0
    %179 = vmatprep.subr.bf16.mxu0 0
    %180 = vmatpush2.bf16.xpose.msra.mxu0 0
    %181 = vmatprep.subr.bf16.mxu0 0
    %182 = vmatpush2.bf16.xpose.msra.mxu0 0
    %183 = vmatprep.mubr.bf16.mxu0 0
    %184 = vmatmul.mubr.bf16.gmra.mxu0 %v149
    %v185 = vpop.f32.mrf.mxu0
    %v186 = vadd.f32 0.0, %v185
    %v187 = vpop.f32.mrf.mxu0
    %v188 = vpop.f32.mrf.mxu0
    %v189 = vpop.f32.mrf.mxu0
    %190 = vdwg.mxu0
    %v192 = vsel %vm147, %v140, 0
    %194 = vmatprep.subr.bf16.mxu0 0
    %195 = vmatpush1.bf16.xpose.msra.mxu0 0
    %196 = vmatprep.subr.bf16.mxu0 0
    %197 = vmatpush1.bf16.xpose.msra.mxu0 0
    %198 = vmatprep.subr.bf16.mxu0 0
    %199 = vmatpush1.bf16.xpose.msra.mxu0 0
    %200 = vmatprep.subr.bf16.mxu0 0
    %201 = vmatpush1.bf16.xpose.msra.mxu0 0
    %202 = vmatprep.subr.bf16.mxu0 0
    %203 = vmatpush1.bf16.xpose.msra.mxu0 0
    %204 = vmatprep.subr.bf16.mxu0 0
    %205 = vmatpush1.bf16.xpose.msra.mxu0 0
    %206 = vmatprep.subr.bf16.mxu0 0
    %207 = vmatpush1.bf16.xpose.msra.mxu0 0
    %208 = vmatprep.subr.bf16.mxu0 0
    %209 = vmatpush1.bf16.xpose.msra.mxu0 %v192
    %210 = vmatprep.subr.bf16.mxu0 0
    %211 = vmatpush2.bf16.xpose.msra.mxu0 0
    %212 = vmatprep.subr.bf16.mxu0 0
    %213 = vmatpush2.bf16.xpose.msra.mxu0 0
    %214 = vmatprep.subr.bf16.mxu0 0
    %215 = vmatpush2.bf16.xpose.msra.mxu0 0
    %216 = vmatprep.subr.bf16.mxu0 0
    %217 = vmatpush2.bf16.xpose.msra.mxu0 0
    %218 = vmatprep.subr.bf16.mxu0 0
    %219 = vmatpush2.bf16.xpose.msra.mxu0 0
    %220 = vmatprep.subr.bf16.mxu0 0
    %221 = vmatpush2.bf16.xpose.msra.mxu0 0
    %222 = vmatprep.subr.bf16.mxu0 0
    %223 = vmatpush2.bf16.xpose.msra.mxu0 0
    %224 = vmatprep.subr.bf16.mxu0 0
    %225 = vmatpush2.bf16.xpose.msra.mxu0 0
    %226 = vmatprep.mubr.bf16.mxu0 0
    %227 = vmatmul.mubr.bf16.gmra.mxu0 %v192
    %v228 = vpop.f32.mrf.mxu0
    %v229 = vadd.f32 0.0, %v228
    %v230 = vpop.f32.mrf.mxu0
    %v231 = vpop.f32.mrf.mxu0
    %v232 = vpop.f32.mrf.mxu0
    %233 = vdwg.mxu0
    %v235 = vsel %vm147, %v141, 0
    %237 = vmatprep.subr.bf16.mxu0 0
    %238 = vmatpush1.bf16.xpose.msra.mxu0 0
    %239 = vmatprep.subr.bf16.mxu0 0
    %240 = vmatpush1.bf16.xpose.msra.mxu0 0
    %241 = vmatprep.subr.bf16.mxu0 0
    %242 = vmatpush1.bf16.xpose.msra.mxu0 0
    %243 = vmatprep.subr.bf16.mxu0 0
    %244 = vmatpush1.bf16.xpose.msra.mxu0 0
    %245 = vmatprep.subr.bf16.mxu0 0
    %246 = vmatpush1.bf16.xpose.msra.mxu0 0
    %247 = vmatprep.subr.bf16.mxu0 0
    %248 = vmatpush1.bf16.xpose.msra.mxu0 0
    %249 = vmatprep.subr.bf16.mxu0 0
    %250 = vmatpush1.bf16.xpose.msra.mxu0 0
    %251 = vmatprep.subr.bf16.mxu0 0
    %252 = vmatpush1.bf16.xpose.msra.mxu0 %v235
    %253 = vmatprep.subr.bf16.mxu0 0
    %254 = vmatpush2.bf16.xpose.msra.mxu0 0
    %255 = vmatprep.subr.bf16.mxu0 0
    %256 = vmatpush2.bf16.xpose.msra.mxu0 0
    %257 = vmatprep.subr.bf16.mxu0 0
    %258 = vmatpush2.bf16.xpose.msra.mxu0 0
    %259 = vmatprep.subr.bf16.mxu0 0
    %260 = vmatpush2.bf16.xpose.msra.mxu0 0
    %261 = vmatprep.subr.bf16.mxu0 0
    %262 = vmatpush2.bf16.xpose.msra.mxu0 0
    %263 = vmatprep.subr.bf16.mxu0 0
    %264 = vmatpush2.bf16.xpose.msra.mxu0 0
    %265 = vmatprep.subr.bf16.mxu0 0
    %266 = vmatpush2.bf16.xpose.msra.mxu0 0
    %267 = vmatprep.subr.bf16.mxu0 0
    %268 = vmatpush2.bf16.xpose.msra.mxu0 0
    %269 = vmatprep.mubr.bf16.mxu0 0
    %270 = vmatmul.mubr.bf16.gmra.mxu0 %v235
    %v271 = vpop.f32.mrf.mxu0
    %v272 = vadd.f32 0.0, %v271
    %v273 = vpop.f32.mrf.mxu0
    %v274 = vpop.f32.mrf.mxu0
    %v275 = vpop.f32.mrf.mxu0
    %276 = vdwg.mxu0
    %v278 = vsel %vm147, %v142, 0
    %280 = vmatprep.subr.bf16.mxu0 0
    %281 = vmatpush1.bf16.xpose.msra.mxu0 0
    %282 = vmatprep.subr.bf16.mxu0 0
    %283 = vmatpush1.bf16.xpose.msra.mxu0 0
    %284 = vmatprep.subr.bf16.mxu0 0
    %285 = vmatpush1.bf16.xpose.msra.mxu0 0
    %286 = vmatprep.subr.bf16.mxu0 0
    %287 = vmatpush1.bf16.xpose.msra.mxu0 0
    %288 = vmatprep.subr.bf16.mxu0 0
    %289 = vmatpush1.bf16.xpose.msra.mxu0 0
    %290 = vmatprep.subr.bf16.mxu0 0
    %291 = vmatpush1.bf16.xpose.msra.mxu0 0
    %292 = vmatprep.subr.bf16.mxu0 0
    %293 = vmatpush1.bf16.xpose.msra.mxu0 0
    %294 = vmatprep.subr.bf16.mxu0 0
    %295 = vmatpush1.bf16.xpose.msra.mxu0 %v278
    %296 = vmatprep.subr.bf16.mxu0 0
    %297 = vmatpush2.bf16.xpose.msra.mxu0 0
    %298 = vmatprep.subr.bf16.mxu0 0
    %299 = vmatpush2.bf16.xpose.msra.mxu0 0
    %300 = vmatprep.subr.bf16.mxu0 0
    %301 = vmatpush2.bf16.xpose.msra.mxu0 0
    %302 = vmatprep.subr.bf16.mxu0 0
    %303 = vmatpush2.bf16.xpose.msra.mxu0 0
    %304 = vmatprep.subr.bf16.mxu0 0
    %305 = vmatpush2.bf16.xpose.msra.mxu0 0
    %306 = vmatprep.subr.bf16.mxu0 0
    %307 = vmatpush2.bf16.xpose.msra.mxu0 0
    %308 = vmatprep.subr.bf16.mxu0 0
    %309 = vmatpush2.bf16.xpose.msra.mxu0 0
    %310 = vmatprep.subr.bf16.mxu0 0
    %311 = vmatpush2.bf16.xpose.msra.mxu0 0
    %312 = vmatprep.mubr.bf16.mxu0 0
    %313 = vmatmul.mubr.bf16.gmra.mxu0 %v278
    %v314 = vpop.f32.mrf.mxu0
    %v315 = vadd.f32 0.0, %v314
    %v316 = vpop.f32.mrf.mxu0
    %v317 = vpop.f32.mrf.mxu0
    %v318 = vpop.f32.mrf.mxu0
    %319 = vdwg.mxu0
    %v321 = vsel %vm147, %v143, 0
    %323 = vmatprep.subr.bf16.mxu0 0
    %324 = vmatpush1.bf16.xpose.msra.mxu0 0
    %325 = vmatprep.subr.bf16.mxu0 0
    %326 = vmatpush1.bf16.xpose.msra.mxu0 0
    %327 = vmatprep.subr.bf16.mxu0 0
    %328 = vmatpush1.bf16.xpose.msra.mxu0 0
    %329 = vmatprep.subr.bf16.mxu0 0
    %330 = vmatpush1.bf16.xpose.msra.mxu0 0
    %331 = vmatprep.subr.bf16.mxu0 0
    %332 = vmatpush1.bf16.xpose.msra.mxu0 0
    %333 = vmatprep.subr.bf16.mxu0 0
    %334 = vmatpush1.bf16.xpose.msra.mxu0 0
    %335 = vmatprep.subr.bf16.mxu0 0
    %336 = vmatpush1.bf16.xpose.msra.mxu0 0
    %337 = vmatprep.subr.bf16.mxu0 0
    %338 = vmatpush1.bf16.xpose.msra.mxu0 %v321
    %339 = vmatprep.subr.bf16.mxu0 0
    %340 = vmatpush2.bf16.xpose.msra.mxu0 0
    %341 = vmatprep.subr.bf16.mxu0 0
    %342 = vmatpush2.bf16.xpose.msra.mxu0 0
    %343 = vmatprep.subr.bf16.mxu0 0
    %344 = vmatpush2.bf16.xpose.msra.mxu0 0
    %345 = vmatprep.subr.bf16.mxu0 0
    %346 = vmatpush2.bf16.xpose.msra.mxu0 0
    %347 = vmatprep.subr.bf16.mxu0 0
    %348 = vmatpush2.bf16.xpose.msra.mxu0 0
    %349 = vmatprep.subr.bf16.mxu0 0
    %350 = vmatpush2.bf16.xpose.msra.mxu0 0
    %351 = vmatprep.subr.bf16.mxu0 0
    %352 = vmatpush2.bf16.xpose.msra.mxu0 0
    %353 = vmatprep.subr.bf16.mxu0 0
    %354 = vmatpush2.bf16.xpose.msra.mxu0 0
    %355 = vmatprep.mubr.bf16.mxu0 0
    %356 = vmatmul.mubr.bf16.gmra.mxu0 %v321
    %v357 = vpop.f32.mrf.mxu0
    %v358 = vadd.f32 0.0, %v357
    %v359 = vpop.f32.mrf.mxu0
    %v360 = vpop.f32.mrf.mxu0
    %v361 = vpop.f32.mrf.mxu0
    %362 = vdwg.mxu0
    %v364 = vsel %vm147, %v144, 0
    %366 = vmatprep.subr.bf16.mxu0 0
    %367 = vmatpush1.bf16.xpose.msra.mxu0 0
    %368 = vmatprep.subr.bf16.mxu0 0
    %369 = vmatpush1.bf16.xpose.msra.mxu0 0
    %370 = vmatprep.subr.bf16.mxu0 0
    %371 = vmatpush1.bf16.xpose.msra.mxu0 0
    %372 = vmatprep.subr.bf16.mxu0 0
    %373 = vmatpush1.bf16.xpose.msra.mxu0 0
    %374 = vmatprep.subr.bf16.mxu0 0
    %375 = vmatpush1.bf16.xpose.msra.mxu0 0
    %376 = vmatprep.subr.bf16.mxu0 0
    %377 = vmatpush1.bf16.xpose.msra.mxu0 0
    %378 = vmatprep.subr.bf16.mxu0 0
    %379 = vmatpush1.bf16.xpose.msra.mxu0 0
    %380 = vmatprep.subr.bf16.mxu0 0
    %381 = vmatpush1.bf16.xpose.msra.mxu0 %v364
    %382 = vmatprep.subr.bf16.mxu0 0
    %383 = vmatpush2.bf16.xpose.msra.mxu0 0
    %384 = vmatprep.subr.bf16.mxu0 0
    %385 = vmatpush2.bf16.xpose.msra.mxu0 0
    %386 = vmatprep.subr.bf16.mxu0 0
    %387 = vmatpush2.bf16.xpose.msra.mxu0 0
    %388 = vmatprep.subr.bf16.mxu0 0
    %389 = vmatpush2.bf16.xpose.msra.mxu0 0
    %390 = vmatprep.subr.bf16.mxu0 0
    %391 = vmatpush2.bf16.xpose.msra.mxu0 0
    %392 = vmatprep.subr.bf16.mxu0 0
    %393 = vmatpush2.bf16.xpose.msra.mxu0 0
    %394 = vmatprep.subr.bf16.mxu0 0
    %395 = vmatpush2.bf16.xpose.msra.mxu0 0
    %396 = vmatprep.subr.bf16.mxu0 0
    %397 = vmatpush2.bf16.xpose.msra.mxu0 0
    %398 = vmatprep.mubr.bf16.mxu0 0
    %399 = vmatmul.mubr.bf16.gmra.mxu0 %v364
    %v400 = vpop.f32.mrf.mxu0
    %v401 = vadd.f32 0.0, %v400
    %v402 = vpop.f32.mrf.mxu0
    %v403 = vpop.f32.mrf.mxu0
    %v404 = vpop.f32.mrf.mxu0
    %405 = vdwg.mxu0
    %v407 = vsel %vm147, %v145, 0
    %409 = vmatprep.subr.bf16.mxu0 0
    %410 = vmatpush1.bf16.xpose.msra.mxu0 0
    %411 = vmatprep.subr.bf16.mxu0 0
    %412 = vmatpush1.bf16.xpose.msra.mxu0 0
    %413 = vmatprep.subr.bf16.mxu0 0
    %414 = vmatpush1.bf16.xpose.msra.mxu0 0
    %415 = vmatprep.subr.bf16.mxu0 0
    %416 = vmatpush1.bf16.xpose.msra.mxu0 0
    %417 = vmatprep.subr.bf16.mxu0 0
    %418 = vmatpush1.bf16.xpose.msra.mxu0 0
    %419 = vmatprep.subr.bf16.mxu0 0
    %420 = vmatpush1.bf16.xpose.msra.mxu0 0
    %421 = vmatprep.subr.bf16.mxu0 0
    %422 = vmatpush1.bf16.xpose.msra.mxu0 0
    %423 = vmatprep.subr.bf16.mxu0 0
    %424 = vmatpush1.bf16.xpose.msra.mxu0 %v407
    %425 = vmatprep.subr.bf16.mxu0 0
    %426 = vmatpush2.bf16.xpose.msra.mxu0 0
    %427 = vmatprep.subr.bf16.mxu0 0
    %428 = vmatpush2.bf16.xpose.msra.mxu0 0
    %429 = vmatprep.subr.bf16.mxu0 0
    %430 = vmatpush2.bf16.xpose.msra.mxu0 0
    %431 = vmatprep.subr.bf16.mxu0 0
    %432 = vmatpush2.bf16.xpose.msra.mxu0 0
    %433 = vmatprep.subr.bf16.mxu0 0
    %434 = vmatpush2.bf16.xpose.msra.mxu0 0
    %435 = vmatprep.subr.bf16.mxu0 0
    %436 = vmatpush2.bf16.xpose.msra.mxu0 0
    %437 = vmatprep.subr.bf16.mxu0 0
    %438 = vmatpush2.bf16.xpose.msra.mxu0 0
    %439 = vmatprep.subr.bf16.mxu0 0
    %440 = vmatpush2.bf16.xpose.msra.mxu0 0
    %441 = vmatprep.mubr.bf16.mxu0 0
    %442 = vmatmul.mubr.bf16.gmra.mxu0 %v407
    %v443 = vpop.f32.mrf.mxu0
    %v444 = vadd.f32 0.0, %v443
    %v445 = vpop.f32.mrf.mxu0
    %v446 = vpop.f32.mrf.mxu0
    %v447 = vpop.f32.mrf.mxu0
    %448 = vdwg.mxu0
    %v450 = vsel %vm147, %v146, 0
    %452 = vmatprep.subr.bf16.mxu0 0
    %453 = vmatpush1.bf16.xpose.msra.mxu0 0
    %454 = vmatprep.subr.bf16.mxu0 0
    %455 = vmatpush1.bf16.xpose.msra.mxu0 0
    %456 = vmatprep.subr.bf16.mxu0 0
    %457 = vmatpush1.bf16.xpose.msra.mxu0 0
    %458 = vmatprep.subr.bf16.mxu0 0
    %459 = vmatpush1.bf16.xpose.msra.mxu0 0
    %460 = vmatprep.subr.bf16.mxu0 0
    %461 = vmatpush1.bf16.xpose.msra.mxu0 0
    %462 = vmatprep.subr.bf16.mxu0 0
    %463 = vmatpush1.bf16.xpose.msra.mxu0 0
    %464 = vmatprep.subr.bf16.mxu0 0
    %465 = vmatpush1.bf16.xpose.msra.mxu0 0
    %466 = vmatprep.subr.bf16.mxu0 0
    %467 = vmatpush1.bf16.xpose.msra.mxu0 %v450
    %468 = vmatprep.subr.bf16.mxu0 0
    %469 = vmatpush2.bf16.xpose.msra.mxu0 0
    %470 = vmatprep.subr.bf16.mxu0 0
    %471 = vmatpush2.bf16.xpose.msra.mxu0 0
    %472 = vmatprep.subr.bf16.mxu0 0
    %473 = vmatpush2.bf16.xpose.msra.mxu0 0
    %474 = vmatprep.subr.bf16.mxu0 0
    %475 = vmatpush2.bf16.xpose.msra.mxu0 0
    %476 = vmatprep.subr.bf16.mxu0 0
    %477 = vmatpush2.bf16.xpose.msra.mxu0 0
    %478 = vmatprep.subr.bf16.mxu0 0
    %479 = vmatpush2.bf16.xpose.msra.mxu0 0
    %480 = vmatprep.subr.bf16.mxu0 0
    %481 = vmatpush2.bf16.xpose.msra.mxu0 0
    %482 = vmatprep.subr.bf16.mxu0 0
    %483 = vmatpush2.bf16.xpose.msra.mxu0 0
    %484 = vmatprep.mubr.bf16.mxu0 0
    %485 = vmatmul.mubr.bf16.gmra.mxu0 %v450
    %v486 = vpop.f32.mrf.mxu0
    %v487 = vadd.f32 0.0, %v486
    %v488 = vpop.f32.mrf.mxu0
    %v489 = vpop.f32.mrf.mxu0
    %v490 = vpop.f32.mrf.mxu0
    %491 = vdwg.mxu0
    %v500 = vrot.slane %v186, 7
    %v501 = vrot.slane %v229, 6
    %vm502 = vcmask 1041409
    %v503 = vsel %vm502, %v501, %v500
    %v504 = vrot.slane %v272, 5
    %vm505 = vcmask 1042434
    %v506 = vsel %vm505, %v504, %v503
    %v507 = vrot.slane %v315, 4
    %vm508 = vcmask 1043459
    %v509 = vsel %vm508, %v507, %v506
    %v510 = vrot.slane %v358, 3
    %vm511 = vcmask 1044484
    %v512 = vsel %vm511, %v510, %v509
    %v513 = vrot.slane %v401, 2
    %vm514 = vcmask 1045509
    %v515 = vsel %vm514, %v513, %v512
    %v516 = vrot.slane %v444, 1
    %vm517 = vcmask 1046534
    %v518 = vsel %vm517, %v516, %v515
    %vm519 = vcmask 1047559
    %v520 = vsel %vm519, %v487, %v518
    %521 = vrot.lane.b32.xlu0 %v520, 32
    %v522 = vpop.permute.xlu0 %521
    %v524 = vrot.slane %v229, 7
    %v525 = vsel %vm502, %v524, %v186
    %v526 = vrot.slane %v272, 6
    %v527 = vsel %vm505, %v526, %v525
    %v528 = vrot.slane %v315, 5
    %v529 = vsel %vm508, %v528, %v527
    %v530 = vrot.slane %v358, 4
    %v531 = vsel %vm511, %v530, %v529
    %v532 = vrot.slane %v401, 3
    %v533 = vsel %vm514, %v532, %v531
    %v534 = vrot.slane %v444, 2
    %v535 = vsel %vm517, %v534, %v533
    %v536 = vrot.slane %v487, 1
    %v537 = vsel %vm519, %v536, %v535
    %538 = vrot.lane.b32.xlu0 %v537, 38
    %v539 = vpop.permute.xlu0 %538
    %v541 = vrot.slane %v186, 1
    %v542 = vsel %vm502, %v229, %v541
    %v543 = vrot.slane %v272, 7
    %v544 = vsel %vm505, %v543, %v542
    %v545 = vrot.slane %v315, 6
    %v546 = vsel %vm508, %v545, %v544
    %v547 = vrot.slane %v358, 5
    %v548 = vsel %vm511, %v547, %v546
    %v549 = vrot.slane %v401, 4
    %v550 = vsel %vm514, %v549, %v548
    %v551 = vrot.slane %v444, 3
    %v552 = vsel %vm517, %v551, %v550
    %v553 = vrot.slane %v487, 2
    %v554 = vsel %vm519, %v553, %v552
    %555 = vrot.lane.b32.xlu0 %v554, 43
    %v556 = vpop.permute.xlu0 %555
    %v558 = vrot.slane %v186, 2
    %v559 = vrot.slane %v229, 1
    %v560 = vsel %vm502, %v559, %v558
    %v561 = vsel %vm505, %v272, %v560
    %v562 = vrot.slane %v315, 7
    %v563 = vsel %vm508, %v562, %v561
    %v564 = vrot.slane %v358, 6
    %v565 = vsel %vm511, %v564, %v563
    %v566 = vrot.slane %v401, 5
    %v567 = vsel %vm514, %v566, %v565
    %v568 = vrot.slane %v444, 4
    %v569 = vsel %vm517, %v568, %v567
    %v570 = vrot.slane %v487, 3
    %v571 = vsel %vm519, %v570, %v569
    %572 = vrot.lane.b32.xlu0 %v571, 47
    %v573 = vpop.permute.xlu0 %572
    %v575 = vrot.slane %v186, 3
    %v576 = vrot.slane %v229, 2
    %v577 = vsel %vm502, %v576, %v575
    %v578 = vrot.slane %v272, 1
    %v579 = vsel %vm505, %v578, %v577
    %v580 = vsel %vm508, %v315, %v579
    %v581 = vrot.slane %v358, 7
    %v582 = vsel %vm511, %v581, %v580
    %v583 = vrot.slane %v401, 6
    %v584 = vsel %vm514, %v583, %v582
    %v585 = vrot.slane %v444, 5
    %v586 = vsel %vm517, %v585, %v584
    %v587 = vrot.slane %v487, 4
    %v588 = vsel %vm519, %v587, %v586
    %589 = vrot.lane.b32.xlu0 %v588, 50
    %v590 = vpop.permute.xlu0 %589
    %v592 = vrot.slane %v186, 4
    %v593 = vrot.slane %v229, 3
    %v594 = vsel %vm502, %v593, %v592
    %v595 = vrot.slane %v272, 2
    %v596 = vsel %vm505, %v595, %v594
    %v597 = vrot.slane %v315, 1
    %v598 = vsel %vm508, %v597, %v596
    %v599 = vsel %vm511, %v358, %v598
    %v600 = vrot.slane %v401, 7
    %v601 = vsel %vm514, %v600, %v599
    %v602 = vrot.slane %v444, 6
    %v603 = vsel %vm517, %v602, %v601
    %v604 = vrot.slane %v487, 5
    %v605 = vsel %vm519, %v604, %v603
    %606 = vrot.lane.b32.xlu0 %v605, 52
    %v607 = vpop.permute.xlu0 %606
    %v609 = vrot.slane %v186, 5
    %v610 = vrot.slane %v229, 4
    %v611 = vsel %vm502, %v610, %v609
    %v612 = vrot.slane %v272, 3
    %v613 = vsel %vm505, %v612, %v611
    %v614 = vrot.slane %v315, 2
    %v615 = vsel %vm508, %v614, %v613
    %v616 = vrot.slane %v358, 1
    %v617 = vsel %vm511, %v616, %v615
    %v618 = vsel %vm514, %v401, %v617
    %v619 = vrot.slane %v444, 7
    %v620 = vsel %vm517, %v619, %v618
    %v621 = vrot.slane %v487, 6
    %v622 = vsel %vm519, %v621, %v620
    %623 = vrot.lane.b32.xlu0 %v622, 53
    %v624 = vpop.permute.xlu0 %623
    %v626 = vsel %vm147, %v13, %v522
    %vm627 = vcmask 318464
    %v628 = vsel %vm627, %v626, %v539
    %vm629 = vcmask 367616
    %v630 = vsel %vm629, %v628, %v556
    %vm631 = vcmask 408576
    %v632 = vsel %vm631, %v630, %v573
    %vm633 = vcmask 441344
    %v634 = vsel %vm633, %v632, %v590
    %vm635 = vcmask 465920
    %v636 = vsel %vm635, %v634, %v607
    %vm637 = vcmask 482304
    %v638 = vsel %vm637, %v636, %v624
    %vm639 = vcmask 490496
    %640 = vst.msk [vmem:[#allocation2] sm:$0xff] %vm639, %v638
    // Predicated region
    $region10: #{interaction_arch.1} parent=1 // pred_check
      _
    $region11: #{interaction_arch.1} parent=1 // pred_check_branch
      %642 = sbr.rel (0) target = $region13
    $region12: #{interaction_arch.1} parent=1 // pred_region
      %s644 = ssub.s32 128, 128
      %645 = vsyncadd [#allocation3], %s644
      %s647 = sshll.u32 [#allocation2], 4
      %s648 = int_to_ptr.vmem [resolvable:$true] %s647
      %650 = dma.vmem_to_hbm [thread:$0]  %s648, 128, %s2, [#allocation3]
    $region13: #{interaction_arch.1} parent=1 // pred_fallthru
      _
    // Predicated region
    $region14: #{interaction_arch.1} parent=1 // pred_check
      _
    $region15: #{interaction_arch.1} parent=1 // pred_check_branch
      %652 = sbr.rel (0) target = $region17
    $region16: #{interaction_arch.1} parent=1 // pred_region
      %653 = dma.done [#allocation3], 128
    $region17: #{interaction_arch.1} parent=1 // pred_fallthru
      _
    %654 = vsyncpa [#allocation3], 1

</llo_original>
